<compile_context>
chip_gen: v7x
topology: tpu7x:2x2x1
jax: 0.10.0
libtpu: 0.0.40
codegen_flags: <defaults>
</compile_context>

<pallas_src>
import functools

import jax
import jax.numpy as jnp
from jax.experimental import pallas as pl
from jax.experimental.pallas import tpu as pltpu


LANE = 128
SUBLANE = 8
NEG_INF = -1e30


# ----------------------------------------------------------------------------
# Fused Pallas kernel: whole forward pass in VMEM
# ----------------------------------------------------------------------------
def fused_graph_kernel(edge_ref, x_ref,
                       wc1_ref, bc1_ref, wc2_ref, bc2_ref,
                       w1s_ref, w1d_ref, b1_ref,
                       wf_ref, bf_ref,
                       o_ref, *, num_edges):
    f32 = jnp.float32
    e_pad = edge_ref.shape[0]
    n = x_ref.shape[0]

    # ---- one-hot src/dst selection matrices (E_pad, N) built from edge ids ----
    col_n = jax.lax.broadcasted_iota(jnp.int32, (e_pad, n), 1)
    src_oh = (col_n == edge_ref[:, 0:1]).astype(f32)
    dst_oh = (col_n == edge_ref[:, 1:2]).astype(f32)
    valid = (jax.lax.broadcasted_iota(jnp.int32, (e_pad, 1), 0)
             < num_edges).astype(f32)                              # mask padded edges
    src_ohv = src_oh * valid
    dst_ohv = dst_oh * valid

    # ---- GCN normalization: A_hat = D^-1/2 (A + I) D^-1/2, dense, in VMEM ----
    deg = jnp.sum(dst_ohv, axis=0, keepdims=True) + 1.0            # (1, N), >= 1
    dinv = jax.lax.rsqrt(deg)                                      # (1, N)
    dinv_src = jnp.sum(src_ohv * dinv, axis=1, keepdims=True)      # (E_pad, 1)
    dinv_dst = jnp.sum(dst_ohv * dinv, axis=1, keepdims=True)      # (E_pad, 1)
    norm = dinv_src * dinv_dst * valid                             # (E_pad, 1)
    a_edges = jnp.dot(dst_ohv.T, norm * src_ohv,
                      preferred_element_type=f32)                  # (N, N): A[t, s]
    eye = (jax.lax.broadcasted_iota(jnp.int32, (n, n), 0)
           == jax.lax.broadcasted_iota(jnp.int32, (n, n), 1)).astype(f32)
    a_hat = a_edges + eye * (dinv * dinv)                          # add self loops

    # ---- GCN layer 1: relu(A_hat @ (X @ W1) + b1) ----
    xw = jnp.dot(x_ref[...], wc1_ref[...], preferred_element_type=f32)
    h = jnp.maximum(jnp.dot(a_hat, xw, preferred_element_type=f32)
                    + bc1_ref[...], 0.0)
    # ---- GCN layer 2: relu(A_hat @ (h @ W2) + b2) ----
    hw = jnp.dot(h, wc2_ref[...], preferred_element_type=f32)
    h = jnp.maximum(jnp.dot(a_hat, hw, preferred_element_type=f32)
                    + bc2_ref[...], 0.0)

    # ---- edge gather via one-hot matmul (stays on-chip, never hits HBM) ----
    h_src = jnp.dot(src_oh, h, preferred_element_type=f32)         # (E_pad, d)
    h_dst = jnp.dot(dst_oh, h, preferred_element_type=f32)         # (E_pad, d)

    # ---- edge MLP: relu(cat(h_src, h_dst) @ W_lin1 + b) without the concat ----
    z = jnp.maximum(jnp.dot(h_src, w1s_ref[...], preferred_element_type=f32)
                    + jnp.dot(h_dst, w1d_ref[...], preferred_element_type=f32)
                    + b1_ref[...], 0.0)
    logits = jnp.dot(z, wf_ref[...], preferred_element_type=f32) + bf_ref[...]

    # ---- numerically stable log_softmax over the lane-padded class dim ----
    # padded classes carry bias = -1e30 -> exp underflows to exactly 0.
    m = jnp.max(logits, axis=-1, keepdims=True)
    shifted = logits - m
    lse = jnp.log(jnp.sum(jnp.exp(shifted), axis=-1, keepdims=True))
    o_ref[...] = shifted - lse


def _vmem_spec():
    return pl.BlockSpec(memory_space=pltpu.MemorySpace.VMEM)


def _round_up(v, m):
    return ((v + m - 1) // m) * m


# ----------------------------------------------------------------------------
# Wrapper: one pallas_call for the entire forward
# ----------------------------------------------------------------------------
@jax.jit
def graph_network_forward(params, x, edge_index):
    n, in_feats = x.shape
    e = edge_index.shape[1]
    d = params["w_conv2"].shape[1]
    c = params["w_fin"].shape[1]

    e_pad = _round_up(e, SUBLANE)
    c_pad = _round_up(c, LANE)

    # (E_pad, 2) int32 edge table; padded rows point at node 0 and are masked
    # inside the kernel / sliced off afterwards.
    edge_t = jnp.pad(edge_index.astype(jnp.int32).T, ((0, e_pad - e), (0, 0)))

    # Split lin1 into its src / dst halves (removes the (E, 2d) concat + buffer).
    w1_src = params["w_lin1"][:d, :]
    w1_dst = params["w_lin1"][d:, :]

    # Lane-pad the classifier so the output store is lane-dense (unmasked vst).
    wf = jnp.pad(params["w_fin"], ((0, 0), (0, c_pad - c)))
    bf = jnp.full((1, c_pad), NEG_INF, jnp.float32).at[0, :c].set(params["b_fin"])

    flops = 2 * (
        n * e_pad * n                        # A_hat construction
        + n * in_feats * d + n * n * d       # GCN layer 1
        + n * d * d + n * n * d              # GCN layer 2
        + 2 * e_pad * n * d                  # src/dst one-hot gathers
        + 2 * e_pad * d * d                  # lin1 (split halves)
        + e_pad * d * c_pad)                 # lin_final
    bytes_accessed = 4 * (
        edge_t.size + x.size
        + params["w_conv1"].size + d + params["w_conv2"].size + d
        + 2 * d * d + d + wf.size + bf.size + e_pad * c_pad)

    out = pl.pallas_call(
        functools.partial(fused_graph_kernel, num_edges=e),
        out_shape=jax.ShapeDtypeStruct((e_pad, c_pad), jnp.float32),
        in_specs=[_vmem_spec()] * 11,
        out_specs=_vmem_spec(),
        cost_estimate=pl.CostEstimate(
            flops=flops,
            transcendentals=e_pad * c_pad + e_pad + n,
            bytes_accessed=bytes_accessed),
    )(
        edge_t, x,
        params["w_conv1"], params["b_conv1"].reshape(1, -1),
        params["w_conv2"], params["b_conv2"].reshape(1, -1),
        w1_src, w1_dst, params["b_lin1"].reshape(1, -1),
        wf, bf,
    )
    return out[:e, :c]


# ----------------------------------------------------------------------------
# Pure-JAX reference (same semantics) for a correctness check
# ----------------------------------------------------------------------------
def reference_forward(params, x, edge_index):
    n = x.shape[0]
    src, dst = edge_index[0], edge_index[1]
    deg = jnp.zeros((n,), jnp.float32).at[dst].add(1.0) + 1.0
    dinv = deg ** -0.5
    norm = dinv[src] * dinv[dst]
    a_hat = jnp.zeros((n, n), jnp.float32).at[dst, src].add(norm)
    a_hat = a_hat + jnp.diag(dinv * dinv)
    h = jnp.maximum(a_hat @ (x @ params["w_conv1"]) + params["b_conv1"], 0.0)
    h = jnp.maximum(a_hat @ (h @ params["w_conv2"]) + params["b_conv2"], 0.0)
    xpair = jnp.concatenate([h[src], h[dst]], axis=1)
    z = jnp.maximum(xpair @ params["w_lin1"] + params["b_lin1"], 0.0)
    logits = z @ params["w_fin"] + params["b_fin"]
    return jax.nn.log_softmax(logits, axis=1)


# ----------------------------------------------------------------------------
# Deterministic parameter init (shapes implied by the module __init__)
# ----------------------------------------------------------------------------
def init_params(key, in_feats, d_model, num_classes):
    ks = jax.random.split(key, 8)

    def lin(kw, kb, fan_in, fan_out):
        bound = 1.0 / jnp.sqrt(fan_in)
        w = jax.random.uniform(kw, (fan_in, fan_out), jnp.float32, -bound, bound)
        b = jax.random.uniform(kb, (fan_out,), jnp.float32, -bound, bound)
        return w, b

    w_c1, b_c1 = lin(ks[0], ks[1], in_feats, d_model)
    w_c2, b_c2 = lin(ks[2], ks[3], d_model, d_model)
    w_l1, b_l1 = lin(ks[4], ks[5], d_model * 2, d_model)
    w_lf, b_lf = lin(ks[6], ks[7], d_model, num_classes)
    return dict(
        w_conv1=w_c1, b_conv1=b_c1,
        w_conv2=w_c2, b_conv2=b_c2,
        w_lin1=w_l1, b_lin1=b_l1,
        w_fin=w_lf, b_fin=b_lf,
    )


if __name__ == "__main__":
    IN_FEATS = 8       # GCNConv(8, d_model)
    D_MODEL = 32
    NUM_CLASSES = 4
    N_NODES = 16
    N_EDGES = 24

    key = jax.random.PRNGKey(0)
    k_x, k_e, k_p = jax.random.split(key, 3)

    x = jax.random.normal(k_x, (N_NODES, IN_FEATS), jnp.float32)
    # deterministic edge_index: a ring plus random chords
    ring_src = jnp.arange(N_NODES, dtype=jnp.int32)
    ring_dst = (ring_src + 1) % N_NODES
    extra = jax.random.randint(k_e, (2, N_EDGES - N_NODES), 0, N_NODES, jnp.int32)
    edge_index = jnp.concatenate(
        [jnp.stack([ring_src, ring_dst]), extra], axis=1
    )  # (2, N_EDGES)

    params = init_params(k_p, IN_FEATS, D_MODEL, NUM_CLASSES)

    log_probs = graph_network_forward(params, x, edge_index)
    jax.block_until_ready(log_probs)

    assert log_probs.shape == (N_EDGES, NUM_CLASSES)
    # log_softmax rows should sum (in prob space) to ~1
    assert jnp.allclose(jnp.sum(jnp.exp(log_probs), axis=1), 1.0, atol=1e-5)
    # match the pure-JAX reference
    ref = reference_forward(params, x, edge_index)
    assert jnp.allclose(log_probs, ref, atol=5e-3, rtol=5e-3)

    print("KERNEL_OK")
</pallas_src>

<mosaic_0001>
module attributes {stable_mosaic.version = 11 : i64} {
  func.func @fused_graph_kernel(%arg0: memref<24x2xi32, #tpu.memory_space<vmem>>, %arg1: memref<16x8xf32, #tpu.memory_space<vmem>>, %arg2: memref<8x32xf32, #tpu.memory_space<vmem>>, %arg3: memref<1x32xf32, #tpu.memory_space<vmem>>, %arg4: memref<32x32xf32, #tpu.memory_space<vmem>>, %arg5: memref<1x32xf32, #tpu.memory_space<vmem>>, %arg6: memref<32x32xf32, #tpu.memory_space<vmem>>, %arg7: memref<32x32xf32, #tpu.memory_space<vmem>>, %arg8: memref<1x32xf32, #tpu.memory_space<vmem>>, %arg9: memref<32x128xf32, #tpu.memory_space<vmem>>, %arg10: memref<1x128xf32, #tpu.memory_space<vmem>>, %arg11: memref<24x128xf32, #tpu.memory_space<vmem>>) attributes {dimension_semantics = [], scalar_prefetch = 0 : i64, scratch_operands = 0 : i64, tpu.core_type = #tpu.core_type<tc>} {
    %0 = tpu.iota {dimensions = array<i32: 1>} : vector<24x16xi32>
    %c0 = arith.constant 0 : index
    %c0_0 = arith.constant 0 : index
    %1 = vector.load %arg0[%c0, %c0_0] : memref<24x2xi32, #tpu.memory_space<vmem>>, vector<24x1xi32>
    %2 = vector.broadcast %1 : vector<24x1xi32> to vector<24x16xi32>
    %3 = arith.cmpi eq, %0, %2 : vector<24x16xi32>
    %4 = arith.extui %3 : vector<24x16xi1> to vector<24x16xi32>
    %5 = arith.sitofp %4 : vector<24x16xi32> to vector<24x16xf32>
    %c0_1 = arith.constant 0 : index
    %c1 = arith.constant 1 : index
    %6 = vector.load %arg0[%c0_1, %c1] : memref<24x2xi32, #tpu.memory_space<vmem>>, vector<24x1xi32>
    %7 = vector.broadcast %6 : vector<24x1xi32> to vector<24x16xi32>
    %8 = arith.cmpi eq, %0, %7 : vector<24x16xi32>
    %9 = arith.extui %8 : vector<24x16xi1> to vector<24x16xi32>
    %10 = arith.sitofp %9 : vector<24x16xi32> to vector<24x16xf32>
    %11 = tpu.iota {dimensions = array<i32: 0>} : vector<24x1xi32>
    %c24_i32 = arith.constant 24 : i32
    %12 = vector.broadcast %c24_i32 : i32 to vector<24x1xi32>
    %13 = arith.cmpi slt, %11, %12 : vector<24x1xi32>
    %14 = arith.extui %13 : vector<24x1xi1> to vector<24x1xi32>
    %15 = arith.sitofp %14 : vector<24x1xi32> to vector<24x1xf32>
    %16 = vector.broadcast %15 : vector<24x1xf32> to vector<24x16xf32>
    %17 = arith.mulf %5, %16 : vector<24x16xf32>
    %18 = vector.broadcast %15 : vector<24x1xf32> to vector<24x16xf32>
    %19 = arith.mulf %10, %18 : vector<24x16xf32>
    %cst = arith.constant dense<0.000000e+00> : vector<16xf32>
    %20 = vector.multi_reduction <add>, %19, %cst [0] : vector<24x16xf32> to vector<16xf32>
    %21 = vector.shape_cast %20 : vector<16xf32> to vector<1x16xf32>
    %cst_2 = arith.constant 1.000000e+00 : f32
    %22 = vector.broadcast %cst_2 : f32 to vector<1x16xf32>
    %23 = arith.addf %21, %22 : vector<1x16xf32>
    %24 = math.rsqrt %23 : vector<1x16xf32>
    %25 = vector.broadcast %24 : vector<1x16xf32> to vector<24x16xf32>
    %26 = arith.mulf %17, %25 : vector<24x16xf32>
    %cst_3 = arith.constant dense<0.000000e+00> : vector<24xf32>
    %27 = vector.multi_reduction <add>, %26, %cst_3 [1] : vector<24x16xf32> to vector<24xf32>
    %28 = vector.shape_cast %27 : vector<24xf32> to vector<24x1xf32>
    %29 = vector.broadcast %24 : vector<1x16xf32> to vector<24x16xf32>
    %30 = arith.mulf %19, %29 : vector<24x16xf32>
    %cst_4 = arith.constant dense<0.000000e+00> : vector<24xf32>
    %31 = vector.multi_reduction <add>, %30, %cst_4 [1] : vector<24x16xf32> to vector<24xf32>
    %32 = vector.shape_cast %31 : vector<24xf32> to vector<24x1xf32>
    %33 = arith.mulf %28, %32 : vector<24x1xf32>
    %34 = arith.mulf %33, %15 : vector<24x1xf32>
    %35 = tpu.transpose %19, [1, 0] : vector<24x16xf32> -> vector<16x24xf32>
    %36 = vector.broadcast %34 : vector<24x1xf32> to vector<24x16xf32>
    %37 = arith.mulf %36, %17 : vector<24x16xf32>
    %cst_5 = arith.constant dense<0.000000e+00> : vector<16x16xf32>
    %38 = tpu.matmul %35, %37, %cst_5 {dimension_numbers = #tpu.dot_dimension_numbers<[1], [0], [0], [1], [0, 0, 1, 1], [], []>} : vector<16x24xf32>, vector<24x16xf32>, vector<16x16xf32> -> vector<16x16xf32>
    %39 = tpu.iota {dimensions = array<i32: 0>} : vector<16x16xi32>
    %40 = tpu.iota {dimensions = array<i32: 1>} : vector<16x16xi32>
    %41 = arith.cmpi eq, %39, %40 : vector<16x16xi32>
    %42 = arith.extui %41 : vector<16x16xi1> to vector<16x16xi32>
    %43 = arith.sitofp %42 : vector<16x16xi32> to vector<16x16xf32>
    %44 = arith.mulf %24, %24 : vector<1x16xf32>
    %45 = vector.broadcast %44 : vector<1x16xf32> to vector<16x16xf32>
    %46 = arith.mulf %43, %45 : vector<16x16xf32>
    %47 = arith.addf %38, %46 : vector<16x16xf32>
    %c0_6 = arith.constant 0 : index
    %c0_7 = arith.constant 0 : index
    %48 = vector.load %arg1[%c0_6, %c0_7] : memref<16x8xf32, #tpu.memory_space<vmem>>, vector<16x8xf32>
    %c0_8 = arith.constant 0 : index
    %c0_9 = arith.constant 0 : index
    %49 = vector.load %arg2[%c0_8, %c0_9] : memref<8x32xf32, #tpu.memory_space<vmem>>, vector<8x32xf32>
    %cst_10 = arith.constant dense<0.000000e+00> : vector<16x32xf32>
    %50 = tpu.matmul %48, %49, %cst_10 {dimension_numbers = #tpu.dot_dimension_numbers<[1], [0], [0], [1], [0, 0, 1, 1], [], []>} : vector<16x8xf32>, vector<8x32xf32>, vector<16x32xf32> -> vector<16x32xf32>
    %cst_11 = arith.constant dense<0.000000e+00> : vector<16x32xf32>
    %51 = tpu.matmul %47, %50, %cst_11 {dimension_numbers = #tpu.dot_dimension_numbers<[1], [0], [0], [1], [0, 0, 1, 1], [], []>} : vector<16x16xf32>, vector<16x32xf32>, vector<16x32xf32> -> vector<16x32xf32>
    %c0_12 = arith.constant 0 : index
    %c0_13 = arith.constant 0 : index
    %52 = vector.load %arg3[%c0_12, %c0_13] : memref<1x32xf32, #tpu.memory_space<vmem>>, vector<1x32xf32>
    %53 = vector.broadcast %52 : vector<1x32xf32> to vector<16x32xf32>
    %54 = arith.addf %51, %53 : vector<16x32xf32>
    %cst_14 = arith.constant 0.000000e+00 : f32
    %55 = vector.broadcast %cst_14 : f32 to vector<16x32xf32>
    %56 = arith.maximumf %54, %55 : vector<16x32xf32>
    %c0_15 = arith.constant 0 : index
    %c0_16 = arith.constant 0 : index
    %57 = vector.load %arg4[%c0_15, %c0_16] : memref<32x32xf32, #tpu.memory_space<vmem>>, vector<32x32xf32>
    %cst_17 = arith.constant dense<0.000000e+00> : vector<16x32xf32>
    %58 = tpu.matmul %56, %57, %cst_17 {dimension_numbers = #tpu.dot_dimension_numbers<[1], [0], [0], [1], [0, 0, 1, 1], [], []>} : vector<16x32xf32>, vector<32x32xf32>, vector<16x32xf32> -> vector<16x32xf32>
    %cst_18 = arith.constant dense<0.000000e+00> : vector<16x32xf32>
    %59 = tpu.matmul %47, %58, %cst_18 {dimension_numbers = #tpu.dot_dimension_numbers<[1], [0], [0], [1], [0, 0, 1, 1], [], []>} : vector<16x16xf32>, vector<16x32xf32>, vector<16x32xf32> -> vector<16x32xf32>
    %c0_19 = arith.constant 0 : index
    %c0_20 = arith.constant 0 : index
    %60 = vector.load %arg5[%c0_19, %c0_20] : memref<1x32xf32, #tpu.memory_space<vmem>>, vector<1x32xf32>
    %61 = vector.broadcast %60 : vector<1x32xf32> to vector<16x32xf32>
    %62 = arith.addf %59, %61 : vector<16x32xf32>
    %cst_21 = arith.constant 0.000000e+00 : f32
    %63 = vector.broadcast %cst_21 : f32 to vector<16x32xf32>
    %64 = arith.maximumf %62, %63 : vector<16x32xf32>
    %cst_22 = arith.constant dense<0.000000e+00> : vector<24x32xf32>
    %65 = tpu.matmul %5, %64, %cst_22 {dimension_numbers = #tpu.dot_dimension_numbers<[1], [0], [0], [1], [0, 0, 1, 1], [], []>} : vector<24x16xf32>, vector<16x32xf32>, vector<24x32xf32> -> vector<24x32xf32>
    %cst_23 = arith.constant dense<0.000000e+00> : vector<24x32xf32>
    %66 = tpu.matmul %10, %64, %cst_23 {dimension_numbers = #tpu.dot_dimension_numbers<[1], [0], [0], [1], [0, 0, 1, 1], [], []>} : vector<24x16xf32>, vector<16x32xf32>, vector<24x32xf32> -> vector<24x32xf32>
    %c0_24 = arith.constant 0 : index
    %c0_25 = arith.constant 0 : index
    %67 = vector.load %arg6[%c0_24, %c0_25] : memref<32x32xf32, #tpu.memory_space<vmem>>, vector<32x32xf32>
    %cst_26 = arith.constant dense<0.000000e+00> : vector<24x32xf32>
    %68 = tpu.matmul %65, %67, %cst_26 {dimension_numbers = #tpu.dot_dimension_numbers<[1], [0], [0], [1], [0, 0, 1, 1], [], []>} : vector<24x32xf32>, vector<32x32xf32>, vector<24x32xf32> -> vector<24x32xf32>
    %c0_27 = arith.constant 0 : index
    %c0_28 = arith.constant 0 : index
    %69 = vector.load %arg7[%c0_27, %c0_28] : memref<32x32xf32, #tpu.memory_space<vmem>>, vector<32x32xf32>
    %cst_29 = arith.constant dense<0.000000e+00> : vector<24x32xf32>
    %70 = tpu.matmul %66, %69, %cst_29 {dimension_numbers = #tpu.dot_dimension_numbers<[1], [0], [0], [1], [0, 0, 1, 1], [], []>} : vector<24x32xf32>, vector<32x32xf32>, vector<24x32xf32> -> vector<24x32xf32>
    %71 = arith.addf %68, %70 : vector<24x32xf32>
    %c0_30 = arith.constant 0 : index
    %c0_31 = arith.constant 0 : index
    %72 = vector.load %arg8[%c0_30, %c0_31] : memref<1x32xf32, #tpu.memory_space<vmem>>, vector<1x32xf32>
    %73 = vector.broadcast %72 : vector<1x32xf32> to vector<24x32xf32>
    %74 = arith.addf %71, %73 : vector<24x32xf32>
    %cst_32 = arith.constant 0.000000e+00 : f32
    %75 = vector.broadcast %cst_32 : f32 to vector<24x32xf32>
    %76 = arith.maximumf %74, %75 : vector<24x32xf32>
    %c0_33 = arith.constant 0 : index
    %c0_34 = arith.constant 0 : index
    %77 = vector.load %arg9[%c0_33, %c0_34] : memref<32x128xf32, #tpu.memory_space<vmem>>, vector<32x128xf32>
    %cst_35 = arith.constant dense<0.000000e+00> : vector<24x128xf32>
    %78 = tpu.matmul %76, %77, %cst_35 {dimension_numbers = #tpu.dot_dimension_numbers<[1], [0], [0], [1], [0, 0, 1, 1], [], []>} : vector<24x32xf32>, vector<32x128xf32>, vector<24x128xf32> -> vector<24x128xf32>
    %c0_36 = arith.constant 0 : index
    %c0_37 = arith.constant 0 : index
    %79 = vector.load %arg10[%c0_36, %c0_37] : memref<1x128xf32, #tpu.memory_space<vmem>>, vector<1x128xf32>
    %80 = vector.broadcast %79 : vector<1x128xf32> to vector<24x128xf32>
    %81 = arith.addf %78, %80 : vector<24x128xf32>
    %cst_38 = arith.constant dense<0xFF800000> : vector<24xf32>
    %82 = vector.multi_reduction <maximumf>, %81, %cst_38 [1] : vector<24x128xf32> to vector<24xf32>
    %83 = vector.shape_cast %82 : vector<24xf32> to vector<24x1xf32>
    %84 = vector.broadcast %83 : vector<24x1xf32> to vector<24x128xf32>
    %85 = arith.subf %81, %84 : vector<24x128xf32>
    %86 = math.exp %85 : vector<24x128xf32>
    %cst_39 = arith.constant dense<0.000000e+00> : vector<24xf32>
    %87 = vector.multi_reduction <add>, %86, %cst_39 [1] : vector<24x128xf32> to vector<24xf32>
    %88 = vector.shape_cast %87 : vector<24xf32> to vector<24x1xf32>
    %89 = math.log %88 : vector<24x1xf32>
    %90 = vector.broadcast %89 : vector<24x1xf32> to vector<24x128xf32>
    %91 = arith.subf %85, %90 : vector<24x128xf32>
    %c0_40 = arith.constant 0 : index
    %c0_41 = arith.constant 0 : index
    %92 = vector.load %arg11[%c0_40, %c0_41] : memref<24x128xf32, #tpu.memory_space<vmem>>, vector<24x128xf32>
    tpu.vector_store %arg11[%c0_40, %c0_41], %91 {strides = array<i32>} : memref<24x128xf32, #tpu.memory_space<vmem>>, vector<24x128xf32>,
    return
  }
}

</mosaic_0001>

<llo_original>
// kernel: graph_network_forward.1
$region0: #{graph_network_forward.1}
  #allocation0 [shape = 'u32[]', space=smem, size = 0x4, offset = 0x4, fixed_abs, tag = 'smem constant byte address 0x4 - core index']
  #allocation1 [shape = 'u32[144,128]{1,0:T(1,128)}', space=vmem, size = 0x12000, scoped, tag = 'internal scratch']
  %s0 = inlined_call_operand.vmem [shape: s32[24,2], index: 0, kind: input, shape index: {}]
  %s1 = inlined_call_operand.vmem [shape: f32[16,8], index: 1, kind: input, shape index: {}]
  %s2 = inlined_call_operand.vmem [shape: f32[8,32], index: 2, kind: input, shape index: {}]
  %s3 = inlined_call_operand.vmem [shape: f32[1,32], index: 3, kind: input, shape index: {}]
  %s4 = inlined_call_operand.vmem [shape: f32[32,32], index: 4, kind: input, shape index: {}]
  %s5 = inlined_call_operand.vmem [shape: f32[1,32], index: 5, kind: input, shape index: {}]
  %s6 = inlined_call_operand.vmem [shape: f32[32,32], index: 6, kind: input, shape index: {}]
  %s7 = inlined_call_operand.vmem [shape: f32[32,32], index: 7, kind: input, shape index: {}]
  %s8 = inlined_call_operand.vmem [shape: f32[1,32], index: 8, kind: input, shape index: {}]
  %s9 = inlined_call_operand.vmem [shape: f32[32,128], index: 9, kind: input, shape index: {}]
  %s10 = inlined_call_operand.vmem [shape: f32[1,128], index: 10, kind: input, shape index: {}]
  %s11 = inlined_call_operand.vmem [shape: f32[24,128], index: 11, kind: output, shape index: {}]
  %s12 = sld [smem:[#allocation0]]
  $region54: #{graph_network_forward.1} parent=0
    _
  %s14 = ssub.s32 1, %s12
  %s15 = scalar_select 0, %s14, %s12
  // Predicated region
  $region2: #{graph_network_forward.1} parent=0 // pred_check
    _
  $region3: #{graph_network_forward.1} parent=0 // pred_check_branch
    %17 = sbr.rel (0) target = $region5
  $region4: #{graph_network_forward.1} parent=0 // pred_region
    _
  $region5: #{graph_network_forward.1} parent=0 // pred_fallthru
    _
  // Predicated region
  $region6: #{graph_network_forward.1} parent=0 // pred_check
    _
  $region7: #{graph_network_forward.1} parent=0 // pred_check_branch
    %19 = sbr.rel (0) target = $region9
  $region8: #{graph_network_forward.1} parent=0 // pred_region
    _
  $region9: #{graph_network_forward.1} parent=0 // pred_fallthru
    _
  // Predicated region
  $region10: #{graph_network_forward.1} parent=0 // pred_check
    _
  $region11: #{graph_network_forward.1} parent=0 // pred_check_branch
    %21 = sbr.rel (0) target = $region13
  $region12: #{graph_network_forward.1} parent=0 // pred_region
    _
  $region13: #{graph_network_forward.1} parent=0 // pred_fallthru
    _
  // Predicated region
  $region14: #{graph_network_forward.1} parent=0 // pred_check
    _
  $region15: #{graph_network_forward.1} parent=0 // pred_check_branch
    %23 = sbr.rel (0) target = $region17
  $region16: #{graph_network_forward.1} parent=0 // pred_region
    _
  $region17: #{graph_network_forward.1} parent=0 // pred_fallthru
    _
  // Predicated region
  $region18: #{graph_network_forward.1} parent=0 // pred_check
    _
  $region19: #{graph_network_forward.1} parent=0 // pred_check_branch
    %25 = sbr.rel (0) target = $region21
  $region20: #{graph_network_forward.1} parent=0 // pred_region
    _
  $region21: #{graph_network_forward.1} parent=0 // pred_fallthru
    _
  // Predicated region
  $region22: #{graph_network_forward.1} parent=0 // pred_check
    _
  $region23: #{graph_network_forward.1} parent=0 // pred_check_branch
    %27 = sbr.rel (0) target = $region25
  $region24: #{graph_network_forward.1} parent=0 // pred_region
    _
  $region25: #{graph_network_forward.1} parent=0 // pred_fallthru
    _
  // Predicated region
  $region26: #{graph_network_forward.1} parent=0 // pred_check
    _
  $region27: #{graph_network_forward.1} parent=0 // pred_check_branch
    %29 = sbr.rel (0) target = $region29
  $region28: #{graph_network_forward.1} parent=0 // pred_region
    _
  $region29: #{graph_network_forward.1} parent=0 // pred_fallthru
    _
  // Predicated region
  $region30: #{graph_network_forward.1} parent=0 // pred_check
    _
  $region31: #{graph_network_forward.1} parent=0 // pred_check_branch
    %31 = sbr.rel (0) target = $region33
  $region32: #{graph_network_forward.1} parent=0 // pred_region
    _
  $region33: #{graph_network_forward.1} parent=0 // pred_fallthru
    _
  // Predicated region
  $region34: #{graph_network_forward.1} parent=0 // pred_check
    _
  $region35: #{graph_network_forward.1} parent=0 // pred_check_branch
    %33 = sbr.rel (0) target = $region37
  $region36: #{graph_network_forward.1} parent=0 // pred_region
    _
  $region37: #{graph_network_forward.1} parent=0 // pred_fallthru
    _
  // Predicated region
  $region38: #{graph_network_forward.1} parent=0 // pred_check
    _
  $region39: #{graph_network_forward.1} parent=0 // pred_check_branch
    %35 = sbr.rel (0) target = $region41
  $region40: #{graph_network_forward.1} parent=0 // pred_region
    _
  $region41: #{graph_network_forward.1} parent=0 // pred_fallthru
    _
  // Predicated region
  $region42: #{graph_network_forward.1} parent=0 // pred_check
    _
  $region43: #{graph_network_forward.1} parent=0 // pred_check_branch
    %37 = sbr.rel (0) target = $region45
  $region44: #{graph_network_forward.1} parent=0 // pred_region
    _
  $region45: #{graph_network_forward.1} parent=0 // pred_fallthru
    _
  %v38 = vlaneseq
  %v39 = vand.u32 %v38, 127
  %v40 = vld [vmem:[%s0] sm:$0xff]
  %v41 = vld [vmem:[%s0 + $0x8] sm:$0xff]
  %v42 = vld [vmem:[%s0 + $0x10] sm:$0xff]
  %43 = vset.pattern.permute.xlu0 0
  %44 = vperm.xlu0 %43, %v40
  %v45 = vpop.permute.xlu0 %44
  %46 = vset.pattern.permute.xlu0 0
  %47 = vperm.xlu0 %46, %v41
  %v48 = vpop.permute.xlu0 %47
  %49 = vset.pattern.permute.xlu0 0
  %50 = vperm.xlu0 %49, %v42
  %v51 = vpop.permute.xlu0 %50
  %vm52 = vcmp.eq.s32.totalorder %v39, %v45
  %vm53 = vcmp.eq.s32.totalorder %v39, %v48
  %vm54 = vcmp.eq.s32.totalorder %v39, %v51
  %v55 = vsel %vm52, 1, 0
  %v56 = vsel %vm53, 1, 0
  %v57 = vsel %vm54, 1, 0
  %v58 = vcvt.s32.f32 %v55
  %v59 = vcvt.s32.f32 %v56
  %v60 = vcvt.s32.f32 %v57
  %61 = vset.pattern.permute.xlu0 1
  %62 = vperm.xlu0 %61, %v40
  %v63 = vpop.permute.xlu0 %62
  %64 = vset.pattern.permute.xlu0 1
  %65 = vperm.xlu0 %64, %v41
  %v66 = vpop.permute.xlu0 %65
  %67 = vset.pattern.permute.xlu0 1
  %68 = vperm.xlu0 %67, %v42
  %v69 = vpop.permute.xlu0 %68
  %vm70 = vcmp.eq.s32.totalorder %v39, %v63
  %vm71 = vcmp.eq.s32.totalorder %v39, %v66
  %vm72 = vcmp.eq.s32.totalorder %v39, %v69
  %v73 = vsel %vm70, 1, 0
  %v74 = vsel %vm71, 1, 0
  %v75 = vsel %vm72, 1, 0
  %v76 = vcvt.s32.f32 %v73
  %v77 = vcvt.s32.f32 %v74
  %v78 = vcvt.s32.f32 %v75
  %v79 = vlaneseq
  %v80 = vshrl.u32 %v79, 7
  %v81 = vadd.s32 %v80, 8
  %v82 = vadd.s32 %v80, 16
  %vm83 = vcmp.lt.s32.totalorder %v80, 24
  %vm84 = vcmp.lt.s32.totalorder %v81, 24
  %vm85 = vcmp.lt.s32.totalorder %v82, 24
  %v86 = vsel %vm83, 1, 0
  %v87 = vsel %vm84, 1, 0
  %v88 = vsel %vm85, 1, 0
  %v89 = vcvt.s32.f32 %v86
  %v90 = vcvt.s32.f32 %v87
  %v91 = vcvt.s32.f32 %v88
  %v92 = vmul.f32 %v58, %v89
  %v93 = vmul.f32 %v59, %v90
  %v94 = vmul.f32 %v60, %v91
  %v95 = vmul.f32 %v76, %v89
  %v96 = vmul.f32 %v77, %v90
  %v97 = vmul.f32 %v78, %v91
  %vm98 = vcmask 130048
  %v99 = vsel %vm98, %v95, 0.0
  %v100 = vsel %vm98, %v96, 0.0
  %v101 = vadd.f32 %v99, %v100
  %v102 = vsel %vm98, %v97, 0.0
  %v103 = vadd.f32 %v101, %v102
  %v104 = vrot.slane %v103, 4
  %v105 = vadd.f32 %v103, %v104
  %v106 = vrot.slane %v105, 2
  %v107 = vadd.f32 %v105, %v106
  %v108 = vrot.slane %v107, 1
  %v109 = vadd.f32 %v107, %v108
  %v110 = vadd.f32 %v109, 1.0
  %v111 = vrsqrt.pop %v110
  %v112 = vmul.f32 %v92, %v111
  %v113 = vmul.f32 %v93, %v111
  %v114 = vmul.f32 %v94, %v111
  %v115 = vsel %vm98, %v112, 0.0
  %116 = vadd.xlane.f32.xlu0 %v115
  %v117 = vpop.xlane.xlu0 %116
  %v118 = vsel %vm98, %v113, 0.0
  %119 = vadd.xlane.f32.xlu0 %v118
  %v120 = vpop.xlane.xlu0 %119
  %v121 = vsel %vm98, %v114, 0.0
  %122 = vadd.xlane.f32.xlu0 %v121
  %v123 = vpop.xlane.xlu0 %122
  %v124 = vmul.f32 %v95, %v111
  %v125 = vmul.f32 %v96, %v111
  %v126 = vmul.f32 %v97, %v111
  %v127 = vsel %vm98, %v124, 0.0
  %128 = vadd.xlane.f32.xlu0 %v127
  %v129 = vpop.xlane.xlu0 %128
  %v130 = vsel %vm98, %v125, 0.0
  %131 = vadd.xlane.f32.xlu0 %v130
  %v132 = vpop.xlane.xlu0 %131
  %v133 = vsel %vm98, %v126, 0.0
  %134 = vadd.xlane.f32.xlu0 %v133
  %v135 = vpop.xlane.xlu0 %134
  %v136 = vmul.f32 %v117, %v129
  %v137 = vmul.f32 %v120, %v132
  %v138 = vmul.f32 %v123, %v135
  %v139 = vmul.f32 %v136, %v89
  %v140 = vmul.f32 %v137, %v90
  %v141 = vmul.f32 %v138, %v91
  %142 = vxpose.xlu0.b32.start [1/16] %v95, 128
  %143 = vxpose.xlu0.b32.cont [2/16] %v96, 128
  %144 = vxpose.xlu0.b32.cont [3/16] %v97, 128
  %145 = vxpose.xlu0.b32.cont [4/16] 0.0, 128
  %146 = vxpose.xlu0.b32.cont [5/16] 0.0, 128
  %147 = vxpose.xlu0.b32.cont [6/16] 0.0, 128
  %148 = vxpose.xlu0.b32.cont [7/16] 0.0, 128
  %149 = vxpose.xlu0.b32.cont [8/16] 0.0, 128
  %150 = vxpose.xlu0.b32.cont [9/16] 0.0, 128
  %151 = vxpose.xlu0.b32.cont [10/16] 0.0, 128
  %152 = vxpose.xlu0.b32.cont [11/16] 0.0, 128
  %153 = vxpose.xlu0.b32.cont [12/16] 0.0, 128
  %154 = vxpose.xlu0.b32.cont [13/16] 0.0, 128
  %155 = vxpose.xlu0.b32.cont [14/16] 0.0, 128
  %156 = vxpose.xlu0.b32.cont [15/16] 0.0, 128
  %157 = vxpose.xlu0.b32.end [16/16] 0.0, 128
  %v158 = vpop.trf.xlu0
  %v159 = vpop.trf.xlu0
  %v160 = vpop.trf.xlu0
  %v161 = vpop.trf.xlu0
  %v162 = vpop.trf.xlu0
  %v163 = vpop.trf.xlu0
  %v164 = vpop.trf.xlu0
  %v165 = vpop.trf.xlu0
  %v166 = vpop.trf.xlu0
  %v167 = vpop.trf.xlu0
  %v168 = vpop.trf.xlu0
  %v169 = vpop.trf.xlu0
  %v170 = vpop.trf.xlu0
  %v171 = vpop.trf.xlu0
  %v172 = vpop.trf.xlu0
  %v173 = vpop.trf.xlu0
  %v174 = vmul.f32 %v139, %v92
  %v175 = vmul.f32 %v140, %v93
  %v176 = vmul.f32 %v141, %v94
  %vm177 = vcmp.eq.s32.totalorder %v80, %v39
  %vm178 = vcmp.eq.s32.totalorder %v81, %v39
  %v179 = vsel %vm177, 1, 0
  %v180 = vsel %vm178, 1, 0
  %v181 = vcvt.s32.f32 %v179
  %v182 = vcvt.s32.f32 %v180
  %v183 = vmul.f32 %v111, %v111
  %v184 = vmul.f32 %v181, %v183
  %v185 = vmul.f32 %v182, %v183
  %vm186 = vcmask 195584
  %v188 = vsel %vm186, %v158, 0
  %v191 = vsel %vm186, %v159, 0
  %193 = vmatprep.subr.mxu0 0.0
  %194 = vmatpush1.msra.mxu0 %v174
  %195 = vmatprep.subr.mxu0 0.0
  %196 = vmatpush1.msra.mxu0 %v175
  %197 = vmatprep.subr.mxu0 0.0
  %198 = vmatpush1.msra.mxu0 %v176
  %199 = vmatprep.subr.mxu0 0.0
  %200 = vmatpush1.msra.mxu0 0.0
  %201 = vmatprep.subr.mxu0 0.0
  %202 = vmatpush1.msra.mxu0 0.0
  %203 = vmatprep.subr.mxu0 0.0
  %204 = vmatpush1.msra.mxu0 0.0
  %205 = vmatprep.subr.mxu0 0.0
  %206 = vmatpush1.msra.mxu0 0.0
  %207 = vmatprep.subr.mxu0 0.0
  %208 = vmatpush1.msra.mxu0 0.0
  %209 = vmatprep.subr.mxu0 0.0
  %210 = vmatpush1.msra.mxu0 0.0
  %211 = vmatprep.subr.mxu0 0.0
  %212 = vmatpush1.msra.mxu0 0.0
  %213 = vmatprep.subr.mxu0 0.0
  %214 = vmatpush1.msra.mxu0 0.0
  %215 = vmatprep.subr.mxu0 0.0
  %216 = vmatpush1.msra.mxu0 0.0
  %217 = vmatprep.subr.mxu0 0.0
  %218 = vmatpush1.msra.mxu0 0.0
  %219 = vmatprep.subr.mxu0 0.0
  %220 = vmatpush1.msra.mxu0 0.0
  %221 = vmatprep.subr.mxu0 0.0
  %222 = vmatpush1.msra.mxu0 0.0
  %223 = vmatprep.subr.mxu0 0.0
  %224 = vmatpush1.msra.mxu0 0.0
  %225 = vmatprep.subr.mxu0 0.0
  %226 = vmatpush1.msra.mxu0 0.0
  %227 = vmatprep.subr.mxu0 0.0
  %228 = vmatpush1.msra.mxu0 0.0
  %229 = vmatprep.subr.mxu0 0.0
  %230 = vmatpush1.msra.mxu0 0.0
  %231 = vmatprep.subr.mxu0 0.0
  %232 = vmatpush1.msra.mxu0 0.0
  %233 = vmatprep.subr.mxu0 0.0
  %234 = vmatpush1.msra.mxu0 0.0
  %235 = vmatprep.subr.mxu0 0.0
  %236 = vmatpush1.msra.mxu0 0.0
  %237 = vmatprep.subr.mxu0 0.0
  %238 = vmatpush1.msra.mxu0 0.0
  %239 = vmatprep.subr.mxu0 0.0
  %240 = vmatpush1.msra.mxu0 0.0
  %241 = vmatprep.subr.mxu0 0.0
  %242 = vmatpush1.msra.mxu0 0.0
  %243 = vmatprep.subr.mxu0 0.0
  %244 = vmatpush1.msra.mxu0 0.0
  %245 = vmatprep.subr.mxu0 0.0
  %246 = vmatpush1.msra.mxu0 0.0
  %247 = vmatprep.subr.mxu0 0.0
  %248 = vmatpush1.msra.mxu0 0.0
  %249 = vmatprep.subr.mxu0 0.0
  %250 = vmatpush1.msra.mxu0 0.0
  %251 = vmatprep.subr.mxu0 0.0
  %252 = vmatpush1.msra.mxu0 0.0
  %253 = vmatprep.subr.mxu0 0.0
  %254 = vmatpush1.msra.mxu0 0.0
  %255 = vmatprep.subr.mxu0 0.0
  %256 = vmatpush1.msra.mxu0 0.0
  %257 = vmatprep.mubr.f32.mxu0 0.0
  %258 = vmatmul.mubr.f32.gmra.mrb[0].mxu0 %v188
  %v259 = vpop.f32.mrb[0].mxu0
  %v260 = vadd.f32 %v184, %v259
  %v261 = vpop.f32.mrb[0].mxu0
  %262 = vmatprep.mubr.f32.mxu0 0.0
  %263 = vmatmul.mubr.f32.gmra.mrb[0].mxu0 %v191
  %v264 = vpop.f32.mrb[0].mxu0
  %v265 = vadd.f32 %v185, %v264
  %v266 = vpop.f32.mrb[0].mxu0
  %267 = vdwg.mxu0
  %v268 = vld [vmem:[%s1] sm:$0xff]
  %v269 = vld [vmem:[%s1 + $0x8] sm:$0xff]
  %v270 = vld [vmem:[%s2] sm:$0xff]
  %vm271 = vcmask 64512
  %v273 = vsel %vm271, %v268, 0
  %v276 = vsel %vm271, %v269, 0
  %278 = vmatprep.subr.mxu0 0.0
  %279 = vmatpush1.msra.mxu0 %v270
  %280 = vmatprep.subr.mxu0 0.0
  %281 = vmatpush1.msra.mxu0 0.0
  %282 = vmatprep.subr.mxu0 0.0
  %283 = vmatpush1.msra.mxu0 0.0
  %284 = vmatprep.subr.mxu0 0.0
  %285 = vmatpush1.msra.mxu0 0.0
  %286 = vmatprep.subr.mxu0 0.0
  %287 = vmatpush1.msra.mxu0 0.0
  %288 = vmatprep.subr.mxu0 0.0
  %289 = vmatpush1.msra.mxu0 0.0
  %290 = vmatprep.subr.mxu0 0.0
  %291 = vmatpush1.msra.mxu0 0.0
  %292 = vmatprep.subr.mxu0 0.0
  %293 = vmatpush1.msra.mxu0 0.0
  %294 = vmatprep.subr.mxu0 0.0
  %295 = vmatpush1.msra.mxu0 0.0
  %296 = vmatprep.subr.mxu0 0.0
  %297 = vmatpush1.msra.mxu0 0.0
  %298 = vmatprep.subr.mxu0 0.0
  %299 = vmatpush1.msra.mxu0 0.0
  %300 = vmatprep.subr.mxu0 0.0
  %301 = vmatpush1.msra.mxu0 0.0
  %302 = vmatprep.subr.mxu0 0.0
  %303 = vmatpush1.msra.mxu0 0.0
  %304 = vmatprep.subr.mxu0 0.0
  %305 = vmatpush1.msra.mxu0 0.0
  %306 = vmatprep.subr.mxu0 0.0
  %307 = vmatpush1.msra.mxu0 0.0
  %308 = vmatprep.subr.mxu0 0.0
  %309 = vmatpush1.msra.mxu0 0.0
  %310 = vmatprep.subr.mxu0 0.0
  %311 = vmatpush1.msra.mxu0 0.0
  %312 = vmatprep.subr.mxu0 0.0
  %313 = vmatpush1.msra.mxu0 0.0
  %314 = vmatprep.subr.mxu0 0.0
  %315 = vmatpush1.msra.mxu0 0.0
  %316 = vmatprep.subr.mxu0 0.0
  %317 = vmatpush1.msra.mxu0 0.0
  %318 = vmatprep.subr.mxu0 0.0
  %319 = vmatpush1.msra.mxu0 0.0
  %320 = vmatprep.subr.mxu0 0.0
  %321 = vmatpush1.msra.mxu0 0.0
  %322 = vmatprep.subr.mxu0 0.0
  %323 = vmatpush1.msra.mxu0 0.0
  %324 = vmatprep.subr.mxu0 0.0
  %325 = vmatpush1.msra.mxu0 0.0
  %326 = vmatprep.subr.mxu0 0.0
  %327 = vmatpush1.msra.mxu0 0.0
  %328 = vmatprep.subr.mxu0 0.0
  %329 = vmatpush1.msra.mxu0 0.0
  %330 = vmatprep.subr.mxu0 0.0
  %331 = vmatpush1.msra.mxu0 0.0
  %332 = vmatprep.subr.mxu0 0.0
  %333 = vmatpush1.msra.mxu0 0.0
  %334 = vmatprep.subr.mxu0 0.0
  %335 = vmatpush1.msra.mxu0 0.0
  %336 = vmatprep.subr.mxu0 0.0
  %337 = vmatpush1.msra.mxu0 0.0
  %338 = vmatprep.subr.mxu0 0.0
  %339 = vmatpush1.msra.mxu0 0.0
  %340 = vmatprep.subr.mxu0 0.0
  %341 = vmatpush1.msra.mxu0 0.0
  %342 = vmatprep.mubr.f32.mxu0 0.0
  %343 = vmatmul.mubr.f32.gmra.mrb[0].mxu0 %v273
  %v344 = vpop.f32.mrb[0].mxu0
  %v345 = vadd.f32 0.0, %v344
  %v346 = vpop.f32.mrb[0].mxu0
  %347 = vmatprep.mubr.f32.mxu0 0.0
  %348 = vmatmul.mubr.f32.gmra.mrb[0].mxu0 %v276
  %v349 = vpop.f32.mrb[0].mxu0
  %v350 = vadd.f32 0.0, %v349
  %v351 = vpop.f32.mrb[0].mxu0
  %352 = vdwg.mxu0
  %v353 = vld [vmem:[%s3] sm:$0x1]
  %v355 = vlaneseq
  %v356 = vshrl.u32 %v355, 7
  %v357 = vsub.s32 0, %v356
  %v358 = vrot.slane %v353, %v357
  %v361 = vsel %vm98, %v260, 0
  %v364 = vsel %vm98, %v265, 0
  %366 = vmatprep.subr.mxu0 0.0
  %367 = vmatpush1.msra.mxu0 %v345
  %368 = vmatprep.subr.mxu0 0.0
  %369 = vmatpush1.msra.mxu0 %v350
  %370 = vmatprep.subr.mxu0 0.0
  %371 = vmatpush1.msra.mxu0 0.0
  %372 = vmatprep.subr.mxu0 0.0
  %373 = vmatpush1.msra.mxu0 0.0
  %374 = vmatprep.subr.mxu0 0.0
  %375 = vmatpush1.msra.mxu0 0.0
  %376 = vmatprep.subr.mxu0 0.0
  %377 = vmatpush1.msra.mxu0 0.0
  %378 = vmatprep.subr.mxu0 0.0
  %379 = vmatpush1.msra.mxu0 0.0
  %380 = vmatprep.subr.mxu0 0.0
  %381 = vmatpush1.msra.mxu0 0.0
  %382 = vmatprep.subr.mxu0 0.0
  %383 = vmatpush1.msra.mxu0 0.0
  %384 = vmatprep.subr.mxu0 0.0
  %385 = vmatpush1.msra.mxu0 0.0
  %386 = vmatprep.subr.mxu0 0.0
  %387 = vmatpush1.msra.mxu0 0.0
  %388 = vmatprep.subr.mxu0 0.0
  %389 = vmatpush1.msra.mxu0 0.0
  %390 = vmatprep.subr.mxu0 0.0
  %391 = vmatpush1.msra.mxu0 0.0
  %392 = vmatprep.subr.mxu0 0.0
  %393 = vmatpush1.msra.mxu0 0.0
  %394 = vmatprep.subr.mxu0 0.0
  %395 = vmatpush1.msra.mxu0 0.0
  %396 = vmatprep.subr.mxu0 0.0
  %397 = vmatpush1.msra.mxu0 0.0
  %398 = vmatprep.subr.mxu0 0.0
  %399 = vmatpush1.msra.mxu0 0.0
  %400 = vmatprep.subr.mxu0 0.0
  %401 = vmatpush1.msra.mxu0 0.0
  %402 = vmatprep.subr.mxu0 0.0
  %403 = vmatpush1.msra.mxu0 0.0
  %404 = vmatprep.subr.mxu0 0.0
  %405 = vmatpush1.msra.mxu0 0.0
  %406 = vmatprep.subr.mxu0 0.0
  %407 = vmatpush1.msra.mxu0 0.0
  %408 = vmatprep.subr.mxu0 0.0
  %409 = vmatpush1.msra.mxu0 0.0
  %410 = vmatprep.subr.mxu0 0.0
  %411 = vmatpush1.msra.mxu0 0.0
  %412 = vmatprep.subr.mxu0 0.0
  %413 = vmatpush1.msra.mxu0 0.0
  %414 = vmatprep.subr.mxu0 0.0
  %415 = vmatpush1.msra.mxu0 0.0
  %416 = vmatprep.subr.mxu0 0.0
  %417 = vmatpush1.msra.mxu0 0.0
  %418 = vmatprep.subr.mxu0 0.0
  %419 = vmatpush1.msra.mxu0 0.0
  %420 = vmatprep.subr.mxu0 0.0
  %421 = vmatpush1.msra.mxu0 0.0
  %422 = vmatprep.subr.mxu0 0.0
  %423 = vmatpush1.msra.mxu0 0.0
  %424 = vmatprep.subr.mxu0 0.0
  %425 = vmatpush1.msra.mxu0 0.0
  %426 = vmatprep.subr.mxu0 0.0
  %427 = vmatpush1.msra.mxu0 0.0
  %428 = vmatprep.subr.mxu0 0.0
  %429 = vmatpush1.msra.mxu0 0.0
  %430 = vmatprep.mubr.f32.mxu0 0.0
  %431 = vmatmul.mubr.f32.gmra.mrb[0].mxu0 %v361
  %v432 = vpop.f32.mrb[0].mxu0
  %v433 = vadd.f32 %v358, %v432
  %v434 = vpop.f32.mrb[0].mxu0
  %435 = vmatprep.mubr.f32.mxu0 0.0
  %436 = vmatmul.mubr.f32.gmra.mrb[0].mxu0 %v364
  %v437 = vpop.f32.mrb[0].mxu0
  %v438 = vadd.f32 %v358, %v437
  %v439 = vpop.f32.mrb[0].mxu0
  %440 = vdwg.mxu0
  %v441 = vmax.f32 %v433, 0.0
  %v442 = vmax.f32 %v438, 0.0
  %v443 = vld [vmem:[%s4] sm:$0xff]
  %v444 = vld [vmem:[%s4 + $0x8] sm:$0xff]
  %v445 = vld [vmem:[%s4 + $0x10] sm:$0xff]
  %v446 = vld [vmem:[%s4 + $0x18] sm:$0xff]
  %vm447 = vcmask 261120
  %v449 = vsel %vm447, %v441, 0
  %v452 = vsel %vm447, %v442, 0
  %454 = vmatprep.subr.mxu0 0.0
  %455 = vmatpush1.msra.mxu0 %v443
  %456 = vmatprep.subr.mxu0 0.0
  %457 = vmatpush1.msra.mxu0 %v444
  %458 = vmatprep.subr.mxu0 0.0
  %459 = vmatpush1.msra.mxu0 %v445
  %460 = vmatprep.subr.mxu0 0.0
  %461 = vmatpush1.msra.mxu0 %v446
  %462 = vmatprep.subr.mxu0 0.0
  %463 = vmatpush1.msra.mxu0 0.0
  %464 = vmatprep.subr.mxu0 0.0
  %465 = vmatpush1.msra.mxu0 0.0
  %466 = vmatprep.subr.mxu0 0.0
  %467 = vmatpush1.msra.mxu0 0.0
  %468 = vmatprep.subr.mxu0 0.0
  %469 = vmatpush1.msra.mxu0 0.0
  %470 = vmatprep.subr.mxu0 0.0
  %471 = vmatpush1.msra.mxu0 0.0
  %472 = vmatprep.subr.mxu0 0.0
  %473 = vmatpush1.msra.mxu0 0.0
  %474 = vmatprep.subr.mxu0 0.0
  %475 = vmatpush1.msra.mxu0 0.0
  %476 = vmatprep.subr.mxu0 0.0
  %477 = vmatpush1.msra.mxu0 0.0
  %478 = vmatprep.subr.mxu0 0.0
  %479 = vmatpush1.msra.mxu0 0.0
  %480 = vmatprep.subr.mxu0 0.0
  %481 = vmatpush1.msra.mxu0 0.0
  %482 = vmatprep.subr.mxu0 0.0
  %483 = vmatpush1.msra.mxu0 0.0
  %484 = vmatprep.subr.mxu0 0.0
  %485 = vmatpush1.msra.mxu0 0.0
  %486 = vmatprep.subr.mxu0 0.0
  %487 = vmatpush1.msra.mxu0 0.0
  %488 = vmatprep.subr.mxu0 0.0
  %489 = vmatpush1.msra.mxu0 0.0
  %490 = vmatprep.subr.mxu0 0.0
  %491 = vmatpush1.msra.mxu0 0.0
  %492 = vmatprep.subr.mxu0 0.0
  %493 = vmatpush1.msra.mxu0 0.0
  %494 = vmatprep.subr.mxu0 0.0
  %495 = vmatpush1.msra.mxu0 0.0
  %496 = vmatprep.subr.mxu0 0.0
  %497 = vmatpush1.msra.mxu0 0.0
  %498 = vmatprep.subr.mxu0 0.0
  %499 = vmatpush1.msra.mxu0 0.0
  %500 = vmatprep.subr.mxu0 0.0
  %501 = vmatpush1.msra.mxu0 0.0
  %502 = vmatprep.subr.mxu0 0.0
  %503 = vmatpush1.msra.mxu0 0.0
  %504 = vmatprep.subr.mxu0 0.0
  %505 = vmatpush1.msra.mxu0 0.0
  %506 = vmatprep.subr.mxu0 0.0
  %507 = vmatpush1.msra.mxu0 0.0
  %508 = vmatprep.subr.mxu0 0.0
  %509 = vmatpush1.msra.mxu0 0.0
  %510 = vmatprep.subr.mxu0 0.0
  %511 = vmatpush1.msra.mxu0 0.0
  %512 = vmatprep.subr.mxu0 0.0
  %513 = vmatpush1.msra.mxu0 0.0
  %514 = vmatprep.subr.mxu0 0.0
  %515 = vmatpush1.msra.mxu0 0.0
  %516 = vmatprep.subr.mxu0 0.0
  %517 = vmatpush1.msra.mxu0 0.0
  %518 = vmatprep.mubr.f32.mxu0 0.0
  %519 = vmatmul.mubr.f32.gmra.mrb[0].mxu0 %v449
  %v520 = vpop.f32.mrb[0].mxu0
  %v521 = vadd.f32 0.0, %v520
  %v522 = vpop.f32.mrb[0].mxu0
  %523 = vmatprep.mubr.f32.mxu0 0.0
  %524 = vmatmul.mubr.f32.gmra.mrb[0].mxu0 %v452
  %v525 = vpop.f32.mrb[0].mxu0
  %v526 = vadd.f32 0.0, %v525
  %v527 = vpop.f32.mrb[0].mxu0
  %528 = vdwg.mxu0
  %v529 = vld [vmem:[%s5] sm:$0x1]
  %v531 = vlaneseq
  %v532 = vshrl.u32 %v531, 7
  %v533 = vsub.s32 0, %v532
  %v534 = vrot.slane %v529, %v533
  %536 = vmatprep.subr.mxu0 0.0
  %537 = vmatpush1.msra.mxu0 %v521
  %538 = vmatprep.subr.mxu0 0.0
  %539 = vmatpush1.msra.mxu0 %v526
  %540 = vmatprep.subr.mxu0 0.0
  %541 = vmatpush1.msra.mxu0 0.0
  %542 = vmatprep.subr.mxu0 0.0
  %543 = vmatpush1.msra.mxu0 0.0
  %544 = vmatprep.subr.mxu0 0.0
  %545 = vmatpush1.msra.mxu0 0.0
  %546 = vmatprep.subr.mxu0 0.0
  %547 = vmatpush1.msra.mxu0 0.0
  %548 = vmatprep.subr.mxu0 0.0
  %549 = vmatpush1.msra.mxu0 0.0
  %550 = vmatprep.subr.mxu0 0.0
  %551 = vmatpush1.msra.mxu0 0.0
  %552 = vmatprep.subr.mxu0 0.0
  %553 = vmatpush1.msra.mxu0 0.0
  %554 = vmatprep.subr.mxu0 0.0
  %555 = vmatpush1.msra.mxu0 0.0
  %556 = vmatprep.subr.mxu0 0.0
  %557 = vmatpush1.msra.mxu0 0.0
  %558 = vmatprep.subr.mxu0 0.0
  %559 = vmatpush1.msra.mxu0 0.0
  %560 = vmatprep.subr.mxu0 0.0
  %561 = vmatpush1.msra.mxu0 0.0
  %562 = vmatprep.subr.mxu0 0.0
  %563 = vmatpush1.msra.mxu0 0.0
  %564 = vmatprep.subr.mxu0 0.0
  %565 = vmatpush1.msra.mxu0 0.0
  %566 = vmatprep.subr.mxu0 0.0
  %567 = vmatpush1.msra.mxu0 0.0
  %568 = vmatprep.subr.mxu0 0.0
  %569 = vmatpush1.msra.mxu0 0.0
  %570 = vmatprep.subr.mxu0 0.0
  %571 = vmatpush1.msra.mxu0 0.0
  %572 = vmatprep.subr.mxu0 0.0
  %573 = vmatpush1.msra.mxu0 0.0
  %574 = vmatprep.subr.mxu0 0.0
  %575 = vmatpush1.msra.mxu0 0.0
  %576 = vmatprep.subr.mxu0 0.0
  %577 = vmatpush1.msra.mxu0 0.0
  %578 = vmatprep.subr.mxu0 0.0
  %579 = vmatpush1.msra.mxu0 0.0
  %580 = vmatprep.subr.mxu0 0.0
  %581 = vmatpush1.msra.mxu0 0.0
  %582 = vmatprep.subr.mxu0 0.0
  %583 = vmatpush1.msra.mxu0 0.0
  %584 = vmatprep.subr.mxu0 0.0
  %585 = vmatpush1.msra.mxu0 0.0
  %586 = vmatprep.subr.mxu0 0.0
  %587 = vmatpush1.msra.mxu0 0.0
  %588 = vmatprep.subr.mxu0 0.0
  %589 = vmatpush1.msra.mxu0 0.0
  %590 = vmatprep.subr.mxu0 0.0
  %591 = vmatpush1.msra.mxu0 0.0
  %592 = vmatprep.subr.mxu0 0.0
  %593 = vmatpush1.msra.mxu0 0.0
  %594 = vmatprep.subr.mxu0 0.0
  %595 = vmatpush1.msra.mxu0 0.0
  %596 = vmatprep.subr.mxu0 0.0
  %597 = vmatpush1.msra.mxu0 0.0
  %598 = vmatprep.subr.mxu0 0.0
  %599 = vmatpush1.msra.mxu0 0.0
  %600 = vmatprep.mubr.f32.mxu0 0.0
  %601 = vmatmul.mubr.f32.gmra.mrb[0].mxu0 %v361
  %v602 = vpop.f32.mrb[0].mxu0
  %v603 = vadd.f32 %v534, %v602
  %v604 = vpop.f32.mrb[0].mxu0
  %605 = vmatprep.mubr.f32.mxu0 0.0
  %606 = vmatmul.mubr.f32.gmra.mrb[0].mxu0 %v364
  %v607 = vpop.f32.mrb[0].mxu0
  %v608 = vadd.f32 %v534, %v607
  %v609 = vpop.f32.mrb[0].mxu0
  %610 = vdwg.mxu0
  %v611 = vmax.f32 %v603, 0.0
  %v612 = vmax.f32 %v608, 0.0
  %v614 = vsel %vm98, %v58, 0
  %v617 = vsel %vm98, %v59, 0
  %v620 = vsel %vm98, %v60, 0
  %622 = vmatprep.subr.mxu0 0.0
  %623 = vmatpush1.msra.mxu0 %v611
  %624 = vmatprep.subr.mxu0 0.0
  %625 = vmatpush1.msra.mxu0 %v612
  %626 = vmatprep.subr.mxu0 0.0
  %627 = vmatpush1.msra.mxu0 0.0
  %628 = vmatprep.subr.mxu0 0.0
  %629 = vmatpush1.msra.mxu0 0.0
  %630 = vmatprep.subr.mxu0 0.0
  %631 = vmatpush1.msra.mxu0 0.0
  %632 = vmatprep.subr.mxu0 0.0
  %633 = vmatpush1.msra.mxu0 0.0
  %634 = vmatprep.subr.mxu0 0.0
  %635 = vmatpush1.msra.mxu0 0.0
  %636 = vmatprep.subr.mxu0 0.0
  %637 = vmatpush1.msra.mxu0 0.0
  %638 = vmatprep.subr.mxu0 0.0
  %639 = vmatpush1.msra.mxu0 0.0
  %640 = vmatprep.subr.mxu0 0.0
  %641 = vmatpush1.msra.mxu0 0.0
  %642 = vmatprep.subr.mxu0 0.0
  %643 = vmatpush1.msra.mxu0 0.0
  %644 = vmatprep.subr.mxu0 0.0
  %645 = vmatpush1.msra.mxu0 0.0
  %646 = vmatprep.subr.mxu0 0.0
  %647 = vmatpush1.msra.mxu0 0.0
  %648 = vmatprep.subr.mxu0 0.0
  %649 = vmatpush1.msra.mxu0 0.0
  %650 = vmatprep.subr.mxu0 0.0
  %651 = vmatpush1.msra.mxu0 0.0
  %652 = vmatprep.subr.mxu0 0.0
  %653 = vmatpush1.msra.mxu0 0.0
  %654 = vmatprep.subr.mxu0 0.0
  %655 = vmatpush1.msra.mxu0 0.0
  %656 = vmatprep.subr.mxu0 0.0
  %657 = vmatpush1.msra.mxu0 0.0
  %658 = vmatprep.subr.mxu0 0.0
  %659 = vmatpush1.msra.mxu0 0.0
  %660 = vmatprep.subr.mxu0 0.0
  %661 = vmatpush1.msra.mxu0 0.0
  %662 = vmatprep.subr.mxu0 0.0
  %663 = vmatpush1.msra.mxu0 0.0
  %664 = vmatprep.subr.mxu0 0.0
  %665 = vmatpush1.msra.mxu0 0.0
  %666 = vmatprep.subr.mxu0 0.0
  %667 = vmatpush1.msra.mxu0 0.0
  %668 = vmatprep.subr.mxu0 0.0
  %669 = vmatpush1.msra.mxu0 0.0
  %670 = vmatprep.subr.mxu0 0.0
  %671 = vmatpush1.msra.mxu0 0.0
  %672 = vmatprep.subr.mxu0 0.0
  %673 = vmatpush1.msra.mxu0 0.0
  %674 = vmatprep.subr.mxu0 0.0
  %675 = vmatpush1.msra.mxu0 0.0
  %676 = vmatprep.subr.mxu0 0.0
  %677 = vmatpush1.msra.mxu0 0.0
  %678 = vmatprep.subr.mxu0 0.0
  %679 = vmatpush1.msra.mxu0 0.0
  %680 = vmatprep.subr.mxu0 0.0
  %681 = vmatpush1.msra.mxu0 0.0
  %682 = vmatprep.subr.mxu0 0.0
  %683 = vmatpush1.msra.mxu0 0.0
  %684 = vmatprep.subr.mxu0 0.0
  %685 = vmatpush1.msra.mxu0 0.0
  %686 = vmatprep.mubr.f32.mxu0 0.0
  %687 = vmatmul.mubr.f32.gmra.mrb[0].mxu0 %v614
  %v688 = vpop.f32.mrb[0].mxu0
  %v689 = vadd.f32 0.0, %v688
  %v690 = vpop.f32.mrb[0].mxu0
  %691 = vmatprep.mubr.f32.mxu0 0.0
  %692 = vmatmul.mubr.f32.gmra.mrb[0].mxu0 %v617
  %v693 = vpop.f32.mrb[0].mxu0
  %v694 = vadd.f32 0.0, %v693
  %v695 = vpop.f32.mrb[0].mxu0
  %696 = vmatprep.mubr.f32.mxu0 0.0
  %697 = vmatmul.mubr.f32.gmra.mrb[0].mxu0 %v620
  %v698 = vpop.f32.mrb[0].mxu0
  %v699 = vadd.f32 0.0, %v698
  %v700 = vpop.f32.mrb[0].mxu0
  %701 = vdwg.mxu0
  %v703 = vsel %vm98, %v76, 0
  %v706 = vsel %vm98, %v77, 0
  %v709 = vsel %vm98, %v78, 0
  %711 = vmatprep.subr.mxu0 0.0
  %712 = vmatpush1.msra.mxu0 %v611
  %713 = vmatprep.subr.mxu0 0.0
  %714 = vmatpush1.msra.mxu0 %v612
  %715 = vmatprep.subr.mxu0 0.0
  %716 = vmatpush1.msra.mxu0 0.0
  %717 = vmatprep.subr.mxu0 0.0
  %718 = vmatpush1.msra.mxu0 0.0
  %719 = vmatprep.subr.mxu0 0.0
  %720 = vmatpush1.msra.mxu0 0.0
  %721 = vmatprep.subr.mxu0 0.0
  %722 = vmatpush1.msra.mxu0 0.0
  %723 = vmatprep.subr.mxu0 0.0
  %724 = vmatpush1.msra.mxu0 0.0
  %725 = vmatprep.subr.mxu0 0.0
  %726 = vmatpush1.msra.mxu0 0.0
  %727 = vmatprep.subr.mxu0 0.0
  %728 = vmatpush1.msra.mxu0 0.0
  %729 = vmatprep.subr.mxu0 0.0
  %730 = vmatpush1.msra.mxu0 0.0
  %731 = vmatprep.subr.mxu0 0.0
  %732 = vmatpush1.msra.mxu0 0.0
  %733 = vmatprep.subr.mxu0 0.0
  %734 = vmatpush1.msra.mxu0 0.0
  %735 = vmatprep.subr.mxu0 0.0
  %736 = vmatpush1.msra.mxu0 0.0
  %737 = vmatprep.subr.mxu0 0.0
  %738 = vmatpush1.msra.mxu0 0.0
  %739 = vmatprep.subr.mxu0 0.0
  %740 = vmatpush1.msra.mxu0 0.0
  %741 = vmatprep.subr.mxu0 0.0
  %742 = vmatpush1.msra.mxu0 0.0
  %743 = vmatprep.subr.mxu0 0.0
  %744 = vmatpush1.msra.mxu0 0.0
  %745 = vmatprep.subr.mxu0 0.0
  %746 = vmatpush1.msra.mxu0 0.0
  %747 = vmatprep.subr.mxu0 0.0
  %748 = vmatpush1.msra.mxu0 0.0
  %749 = vmatprep.subr.mxu0 0.0
  %750 = vmatpush1.msra.mxu0 0.0
  %751 = vmatprep.subr.mxu0 0.0
  %752 = vmatpush1.msra.mxu0 0.0
  %753 = vmatprep.subr.mxu0 0.0
  %754 = vmatpush1.msra.mxu0 0.0
  %755 = vmatprep.subr.mxu0 0.0
  %756 = vmatpush1.msra.mxu0 0.0
  %757 = vmatprep.subr.mxu0 0.0
  %758 = vmatpush1.msra.mxu0 0.0
  %759 = vmatprep.subr.mxu0 0.0
  %760 = vmatpush1.msra.mxu0 0.0
  %761 = vmatprep.subr.mxu0 0.0
  %762 = vmatpush1.msra.mxu0 0.0
  %763 = vmatprep.subr.mxu0 0.0
  %764 = vmatpush1.msra.mxu0 0.0
  %765 = vmatprep.subr.mxu0 0.0
  %766 = vmatpush1.msra.mxu0 0.0
  %767 = vmatprep.subr.mxu0 0.0
  %768 = vmatpush1.msra.mxu0 0.0
  %769 = vmatprep.subr.mxu0 0.0
  %770 = vmatpush1.msra.mxu0 0.0
  %771 = vmatprep.subr.mxu0 0.0
  %772 = vmatpush1.msra.mxu0 0.0
  %773 = vmatprep.subr.mxu0 0.0
  %774 = vmatpush1.msra.mxu0 0.0
  %775 = vmatprep.mubr.f32.mxu0 0.0
  %776 = vmatmul.mubr.f32.gmra.mrb[0].mxu0 %v703
  %v777 = vpop.f32.mrb[0].mxu0
  %v778 = vadd.f32 0.0, %v777
  %v779 = vpop.f32.mrb[0].mxu0
  %780 = vmatprep.mubr.f32.mxu0 0.0
  %781 = vmatmul.mubr.f32.gmra.mrb[0].mxu0 %v706
  %v782 = vpop.f32.mrb[0].mxu0
  %v783 = vadd.f32 0.0, %v782
  %v784 = vpop.f32.mrb[0].mxu0
  %785 = vmatprep.mubr.f32.mxu0 0.0
  %786 = vmatmul.mubr.f32.gmra.mrb[0].mxu0 %v709
  %v787 = vpop.f32.mrb[0].mxu0
  %v788 = vadd.f32 0.0, %v787
  %v789 = vpop.f32.mrb[0].mxu0
  %790 = vdwg.mxu0
  %v791 = vld [vmem:[%s6] sm:$0xff]
  %v792 = vld [vmem:[%s6 + $0x8] sm:$0xff]
  %v793 = vld [vmem:[%s6 + $0x10] sm:$0xff]
  %v794 = vld [vmem:[%s6 + $0x18] sm:$0xff]
  %v795 = vld [vmem:[%s7] sm:$0xff]
  %v796 = vld [vmem:[%s7 + $0x8] sm:$0xff]
  %v797 = vld [vmem:[%s7 + $0x10] sm:$0xff]
  %v798 = vld [vmem:[%s7 + $0x18] sm:$0xff]
  %v800 = vsel %vm447, %v778, 0
  %v803 = vsel %vm447, %v783, 0
  %v806 = vsel %vm447, %v788, 0
  %808 = vmatprep.subr.mxu0 0.0
  %809 = vmatpush1.msra.mxu0 %v795
  %810 = vmatprep.subr.mxu0 0.0
  %811 = vmatpush1.msra.mxu0 %v796
  %812 = vmatprep.subr.mxu0 0.0
  %813 = vmatpush1.msra.mxu0 %v797
  %814 = vmatprep.subr.mxu0 0.0
  %815 = vmatpush1.msra.mxu0 %v798
  %816 = vmatprep.subr.mxu0 0.0
  %817 = vmatpush1.msra.mxu0 0.0
  %818 = vmatprep.subr.mxu0 0.0
  %819 = vmatpush1.msra.mxu0 0.0
  %820 = vmatprep.subr.mxu0 0.0
  %821 = vmatpush1.msra.mxu0 0.0
  %822 = vmatprep.subr.mxu0 0.0
  %823 = vmatpush1.msra.mxu0 0.0
  %824 = vmatprep.subr.mxu0 0.0
  %825 = vmatpush1.msra.mxu0 0.0
  %826 = vmatprep.subr.mxu0 0.0
  %827 = vmatpush1.msra.mxu0 0.0
  %828 = vmatprep.subr.mxu0 0.0
  %829 = vmatpush1.msra.mxu0 0.0
  %830 = vmatprep.subr.mxu0 0.0
  %831 = vmatpush1.msra.mxu0 0.0
  %832 = vmatprep.subr.mxu0 0.0
  %833 = vmatpush1.msra.mxu0 0.0
  %834 = vmatprep.subr.mxu0 0.0
  %835 = vmatpush1.msra.mxu0 0.0
  %836 = vmatprep.subr.mxu0 0.0
  %837 = vmatpush1.msra.mxu0 0.0
  %838 = vmatprep.subr.mxu0 0.0
  %839 = vmatpush1.msra.mxu0 0.0
  %840 = vmatprep.subr.mxu0 0.0
  %841 = vmatpush1.msra.mxu0 0.0
  %842 = vmatprep.subr.mxu0 0.0
  %843 = vmatpush1.msra.mxu0 0.0
  %844 = vmatprep.subr.mxu0 0.0
  %845 = vmatpush1.msra.mxu0 0.0
  %846 = vmatprep.subr.mxu0 0.0
  %847 = vmatpush1.msra.mxu0 0.0
  %848 = vmatprep.subr.mxu0 0.0
  %849 = vmatpush1.msra.mxu0 0.0
  %850 = vmatprep.subr.mxu0 0.0
  %851 = vmatpush1.msra.mxu0 0.0
  %852 = vmatprep.subr.mxu0 0.0
  %853 = vmatpush1.msra.mxu0 0.0
  %854 = vmatprep.subr.mxu0 0.0
  %855 = vmatpush1.msra.mxu0 0.0
  %856 = vmatprep.subr.mxu0 0.0
  %857 = vmatpush1.msra.mxu0 0.0
  %858 = vmatprep.subr.mxu0 0.0
  %859 = vmatpush1.msra.mxu0 0.0
  %860 = vmatprep.subr.mxu0 0.0
  %861 = vmatpush1.msra.mxu0 0.0
  %862 = vmatprep.subr.mxu0 0.0
  %863 = vmatpush1.msra.mxu0 0.0
  %864 = vmatprep.subr.mxu0 0.0
  %865 = vmatpush1.msra.mxu0 0.0
  %866 = vmatprep.subr.mxu0 0.0
  %867 = vmatpush1.msra.mxu0 0.0
  %868 = vmatprep.subr.mxu0 0.0
  %869 = vmatpush1.msra.mxu0 0.0
  %870 = vmatprep.subr.mxu0 0.0
  %871 = vmatpush1.msra.mxu0 0.0
  %872 = vmatprep.mubr.f32.mxu0 0.0
  %873 = vmatmul.mubr.f32.gmra.mrb[0].mxu0 %v800
  %v874 = vpop.f32.mrb[0].mxu0
  %v875 = vadd.f32 0.0, %v874
  %v876 = vpop.f32.mrb[0].mxu0
  %877 = vmatprep.mubr.f32.mxu0 0.0
  %878 = vmatmul.mubr.f32.gmra.mrb[0].mxu0 %v803
  %v879 = vpop.f32.mrb[0].mxu0
  %v880 = vadd.f32 0.0, %v879
  %v881 = vpop.f32.mrb[0].mxu0
  %882 = vmatprep.mubr.f32.mxu0 0.0
  %883 = vmatmul.mubr.f32.gmra.mrb[0].mxu0 %v806
  %v884 = vpop.f32.mrb[0].mxu0
  %v885 = vadd.f32 0.0, %v884
  %v886 = vpop.f32.mrb[0].mxu0
  %887 = vdwg.mxu0
  %v889 = vsel %vm447, %v689, 0
  %v892 = vsel %vm447, %v694, 0
  %v895 = vsel %vm447, %v699, 0
  %897 = vmatprep.subr.mxu0 0.0
  %898 = vmatpush1.msra.mxu0 %v791
  %899 = vmatprep.subr.mxu0 0.0
  %900 = vmatpush1.msra.mxu0 %v792
  %901 = vmatprep.subr.mxu0 0.0
  %902 = vmatpush1.msra.mxu0 %v793
  %903 = vmatprep.subr.mxu0 0.0
  %904 = vmatpush1.msra.mxu0 %v794
  %905 = vmatprep.subr.mxu0 0.0
  %906 = vmatpush1.msra.mxu0 0.0
  %907 = vmatprep.subr.mxu0 0.0
  %908 = vmatpush1.msra.mxu0 0.0
  %909 = vmatprep.subr.mxu0 0.0
  %910 = vmatpush1.msra.mxu0 0.0
  %911 = vmatprep.subr.mxu0 0.0
  %912 = vmatpush1.msra.mxu0 0.0
  %913 = vmatprep.subr.mxu0 0.0
  %914 = vmatpush1.msra.mxu0 0.0
  %915 = vmatprep.subr.mxu0 0.0
  %916 = vmatpush1.msra.mxu0 0.0
  %917 = vmatprep.subr.mxu0 0.0
  %918 = vmatpush1.msra.mxu0 0.0
  %919 = vmatprep.subr.mxu0 0.0
  %920 = vmatpush1.msra.mxu0 0.0
  %921 = vmatprep.subr.mxu0 0.0
  %922 = vmatpush1.msra.mxu0 0.0
  %923 = vmatprep.subr.mxu0 0.0
  %924 = vmatpush1.msra.mxu0 0.0
  %925 = vmatprep.subr.mxu0 0.0
  %926 = vmatpush1.msra.mxu0 0.0
  %927 = vmatprep.subr.mxu0 0.0
  %928 = vmatpush1.msra.mxu0 0.0
  %929 = vmatprep.subr.mxu0 0.0
  %930 = vmatpush1.msra.mxu0 0.0
  %931 = vmatprep.subr.mxu0 0.0
  %932 = vmatpush1.msra.mxu0 0.0
  %933 = vmatprep.subr.mxu0 0.0
  %934 = vmatpush1.msra.mxu0 0.0
  %935 = vmatprep.subr.mxu0 0.0
  %936 = vmatpush1.msra.mxu0 0.0
  %937 = vmatprep.subr.mxu0 0.0
  %938 = vmatpush1.msra.mxu0 0.0
  %939 = vmatprep.subr.mxu0 0.0
  %940 = vmatpush1.msra.mxu0 0.0
  %941 = vmatprep.subr.mxu0 0.0
  %942 = vmatpush1.msra.mxu0 0.0
  %943 = vmatprep.subr.mxu0 0.0
  %944 = vmatpush1.msra.mxu0 0.0
  %945 = vmatprep.subr.mxu0 0.0
  %946 = vmatpush1.msra.mxu0 0.0
  %947 = vmatprep.subr.mxu0 0.0
  %948 = vmatpush1.msra.mxu0 0.0
  %949 = vmatprep.subr.mxu0 0.0
  %950 = vmatpush1.msra.mxu0 0.0
  %951 = vmatprep.subr.mxu0 0.0
  %952 = vmatpush1.msra.mxu0 0.0
  %953 = vmatprep.subr.mxu0 0.0
  %954 = vmatpush1.msra.mxu0 0.0
  %955 = vmatprep.subr.mxu0 0.0
  %956 = vmatpush1.msra.mxu0 0.0
  %957 = vmatprep.subr.mxu0 0.0
  %958 = vmatpush1.msra.mxu0 0.0
  %959 = vmatprep.subr.mxu0 0.0
  %960 = vmatpush1.msra.mxu0 0.0
  %961 = vmatprep.mubr.f32.mxu0 0.0
  %962 = vmatmul.mubr.f32.gmra.mrb[0].mxu0 %v889
  %v963 = vpop.f32.mrb[0].mxu0
  %v964 = vadd.f32 %v875, %v963
  %v965 = vpop.f32.mrb[0].mxu0
  %966 = vmatprep.mubr.f32.mxu0 0.0
  %967 = vmatmul.mubr.f32.gmra.mrb[0].mxu0 %v892
  %v968 = vpop.f32.mrb[0].mxu0
  %v969 = vadd.f32 %v880, %v968
  %v970 = vpop.f32.mrb[0].mxu0
  %971 = vmatprep.mubr.f32.mxu0 0.0
  %972 = vmatmul.mubr.f32.gmra.mrb[0].mxu0 %v895
  %v973 = vpop.f32.mrb[0].mxu0
  %v974 = vadd.f32 %v885, %v973
  %v975 = vpop.f32.mrb[0].mxu0
  %976 = vdwg.mxu0
  %v977 = vld [vmem:[%s8] sm:$0x1]
  %v979 = vlaneseq
  %v980 = vshrl.u32 %v979, 7
  %v981 = vsub.s32 0, %v980
  %v982 = vrot.slane %v977, %v981
  %v984 = vadd.f32 %v964, %v982
  %v985 = vadd.f32 %v969, %v982
  %v986 = vadd.f32 %v974, %v982
  %v987 = vmax.f32 %v984, 0.0
  %v988 = vmax.f32 %v985, 0.0
  %v989 = vmax.f32 %v986, 0.0
  %v990 = vld [vmem:[%s9] sm:$0xff]
  %v991 = vld [vmem:[%s9 + $0x8] sm:$0xff]
  %v992 = vld [vmem:[%s9 + $0x10] sm:$0xff]
  %v993 = vld [vmem:[%s9 + $0x18] sm:$0xff]
  %v994 = vld [vmem:[%s10] sm:$0x1]
  %v996 = vlaneseq
  %v997 = vshrl.u32 %v996, 7
  %v998 = vsub.s32 0, %v997
  %v999 = vrot.slane %v994, %v998
  %v1002 = vsel %vm447, %v987, 0
  %v1005 = vsel %vm447, %v988, 0
  %v1008 = vsel %vm447, %v989, 0
  %1010 = vmatprep.subr.mxu0 0.0
  %1011 = vmatpush1.msra.mxu0 %v990
  %1012 = vmatprep.subr.mxu0 0.0
  %1013 = vmatpush1.msra.mxu0 %v991
  %1014 = vmatprep.subr.mxu0 0.0
  %1015 = vmatpush1.msra.mxu0 %v992
  %1016 = vmatprep.subr.mxu0 0.0
  %1017 = vmatpush1.msra.mxu0 %v993
  %1018 = vmatprep.subr.mxu0 0.0
  %1019 = vmatpush1.msra.mxu0 0.0
  %1020 = vmatprep.subr.mxu0 0.0
  %1021 = vmatpush1.msra.mxu0 0.0
  %1022 = vmatprep.subr.mxu0 0.0
  %1023 = vmatpush1.msra.mxu0 0.0
  %1024 = vmatprep.subr.mxu0 0.0
  %1025 = vmatpush1.msra.mxu0 0.0
  %1026 = vmatprep.subr.mxu0 0.0
  %1027 = vmatpush1.msra.mxu0 0.0
  %1028 = vmatprep.subr.mxu0 0.0
  %1029 = vmatpush1.msra.mxu0 0.0
  %1030 = vmatprep.subr.mxu0 0.0
  %1031 = vmatpush1.msra.mxu0 0.0
  %1032 = vmatprep.subr.mxu0 0.0
  %1033 = vmatpush1.msra.mxu0 0.0
  %1034 = vmatprep.subr.mxu0 0.0
  %1035 = vmatpush1.msra.mxu0 0.0
  %1036 = vmatprep.subr.mxu0 0.0
  %1037 = vmatpush1.msra.mxu0 0.0
  %1038 = vmatprep.subr.mxu0 0.0
  %1039 = vmatpush1.msra.mxu0 0.0
  %1040 = vmatprep.subr.mxu0 0.0
  %1041 = vmatpush1.msra.mxu0 0.0
  %1042 = vmatprep.subr.mxu0 0.0
  %1043 = vmatpush1.msra.mxu0 0.0
  %1044 = vmatprep.subr.mxu0 0.0
  %1045 = vmatpush1.msra.mxu0 0.0
  %1046 = vmatprep.subr.mxu0 0.0
  %1047 = vmatpush1.msra.mxu0 0.0
  %1048 = vmatprep.subr.mxu0 0.0
  %1049 = vmatpush1.msra.mxu0 0.0
  %1050 = vmatprep.subr.mxu0 0.0
  %1051 = vmatpush1.msra.mxu0 0.0
  %1052 = vmatprep.subr.mxu0 0.0
  %1053 = vmatpush1.msra.mxu0 0.0
  %1054 = vmatprep.subr.mxu0 0.0
  %1055 = vmatpush1.msra.mxu0 0.0
  %1056 = vmatprep.subr.mxu0 0.0
  %1057 = vmatpush1.msra.mxu0 0.0
  %1058 = vmatprep.subr.mxu0 0.0
  %1059 = vmatpush1.msra.mxu0 0.0
  %1060 = vmatprep.subr.mxu0 0.0
  %1061 = vmatpush1.msra.mxu0 0.0
  %1062 = vmatprep.subr.mxu0 0.0
  %1063 = vmatpush1.msra.mxu0 0.0
  %1064 = vmatprep.subr.mxu0 0.0
  %1065 = vmatpush1.msra.mxu0 0.0
  %1066 = vmatprep.subr.mxu0 0.0
  %1067 = vmatpush1.msra.mxu0 0.0
  %1068 = vmatprep.subr.mxu0 0.0
  %1069 = vmatpush1.msra.mxu0 0.0
  %1070 = vmatprep.subr.mxu0 0.0
  %1071 = vmatpush1.msra.mxu0 0.0
  %1072 = vmatprep.subr.mxu0 0.0
  %1073 = vmatpush1.msra.mxu0 0.0
  %1074 = vmatprep.mubr.f32.mxu0 0.0
  %1075 = vmatmul.mubr.f32.gmra.mrb[0].mxu0 %v1002
  %v1076 = vpop.f32.mrb[0].mxu0
  %v1077 = vadd.f32 %v999, %v1076
  %v1078 = vpop.f32.mrb[0].mxu0
  %1079 = vmatprep.mubr.f32.mxu0 0.0
  %1080 = vmatmul.mubr.f32.gmra.mrb[0].mxu0 %v1005
  %v1081 = vpop.f32.mrb[0].mxu0
  %v1082 = vadd.f32 %v999, %v1081
  %v1083 = vpop.f32.mrb[0].mxu0
  %1084 = vmatprep.mubr.f32.mxu0 0.0
  %1085 = vmatmul.mubr.f32.gmra.mrb[0].mxu0 %v1008
  %v1086 = vpop.f32.mrb[0].mxu0
  %v1087 = vadd.f32 %v999, %v1086
  %v1088 = vpop.f32.mrb[0].mxu0
  %1089 = vdwg.mxu0
  %1090 = vmax.xlane.f32.xlu0 %v1077
  %v1091 = vpop.xlane.xlu0 %1090
  %1092 = vmax.xlane.f32.xlu0 %v1082
  %v1093 = vpop.xlane.xlu0 %1092
  %1094 = vmax.xlane.f32.xlu0 %v1087
  %v1095 = vpop.xlane.xlu0 %1094
  %v1096 = vsub.f32 %v1077, %v1091
  %v1097 = vsub.f32 %v1082, %v1093
  %v1098 = vsub.f32 %v1087, %v1095
  %v1099 = vmul.f32 %v1096, 1.442695
  %v1100 = vpow.pop %v1099
  %v1101 = vmul.f32 %v1097, 1.442695
  %v1102 = vpow.pop %v1101
  %v1103 = vmul.f32 %v1098, 1.442695
  %v1104 = vpow.pop %v1103
  %1105 = vadd.xlane.f32.xlu0 %v1100
  %v1106 = vpop.xlane.xlu0 %1105
  %1107 = vadd.xlane.f32.xlu0 %v1102
  %v1108 = vpop.xlane.xlu0 %1107
  %1109 = vadd.xlane.f32.xlu0 %v1104
  %v1110 = vpop.xlane.xlu0 %1109
  %v1111 = vlog2.pop %v1106
  %v1112 = vmul.f32 %v1111, 0.6931472
  %v1113 = vlog2.pop %v1108
  %v1114 = vmul.f32 %v1113, 0.6931472
  %v1115 = vlog2.pop %v1110
  %v1116 = vmul.f32 %v1115, 0.6931472
  %v1117 = vsub.f32 %v1096, %v1112
  %v1118 = vsub.f32 %v1097, %v1114
  %v1119 = vsub.f32 %v1098, %v1116
  %1120 = vst [vmem:[%s11] sm:$0xff] %v1117
  %1121 = vst [vmem:[%s11 + $0x8] sm:$0xff] %v1118
  %1122 = vst [vmem:[%s11 + $0x10] sm:$0xff] %v1119
  // Predicated region
  $region46: #{graph_network_forward.1} parent=0 // pred_check
    _
  $region47: #{graph_network_forward.1} parent=0 // pred_check_branch
    %1124 = sbr.rel (0) target = $region49
  $region48: #{graph_network_forward.1} parent=0 // pred_region
    _
  $region49: #{graph_network_forward.1} parent=0 // pred_fallthru
    _
  // Predicated region
  $region50: #{graph_network_forward.1} parent=0 // pred_check
    _
  $region51: #{graph_network_forward.1} parent=0 // pred_check_branch
    %1126 = sbr.rel (0) target = $region53
  $region52: #{graph_network_forward.1} parent=0 // pred_region
    _
  $region53: #{graph_network_forward.1} parent=0 // pred_fallthru
    _

</llo_original>
